<compile_context>
chip_gen: v6e
topology: v6e:2x2x1
jax: 0.10.0
libtpu: 0.0.40
codegen_flags: <defaults>
</compile_context>

<pallas_src>
import functools

import jax
import jax.numpy as jnp
from jax.experimental import pallas as pl
from jax.experimental.pallas import tpu as pltpu

_LANE = 128


def _round_up(x, m):
    return ((x + m - 1) // m) * m


def _pad2d(a, rows, cols):
    return jnp.pad(a, ((0, rows - a.shape[0]), (0, cols - a.shape[1])))


def _vmem_capacity_bytes():
    """Per-core VMEM capacity; conservative (v7x-sized) default off-TPU."""
    try:
        cap = int(pltpu.get_tpu_info().vmem_capacity_bytes)
        if cap > 0:
            return cap
    except Exception:
        pass
    return 64 << 20


def _resident_spec(shape):
    """Constant-index operand kept resident in VMEM; single pipeline buffer."""
    idx = lambda i: (0, 0)
    if hasattr(pl, "Buffered"):
        try:
            return pl.BlockSpec(shape, idx, pipeline_mode=pl.Buffered(1))
        except TypeError:  # older BlockSpec without pipeline_mode kwarg
            pass
    return pl.BlockSpec(shape, idx)


# --------------------------------------------------------------------------
# Fused whole-MLP kernel (weights resident, batch tiled over a 1-D grid)
# --------------------------------------------------------------------------
def _mlp_fused_kernel(*refs, with_mask: bool):
    """refs = x [, mask], w1, b1, w2, b2, w3, b3, out  (one batch tile / step)."""
    if with_mask:
        (x_ref, mask_ref, w1_ref, b1_ref, w2_ref, b2_ref,
         w3_ref, b3_ref, o_ref) = refs
    else:
        (x_ref, w1_ref, b1_ref, w2_ref, b2_ref, w3_ref, b3_ref, o_ref) = refs
        mask_ref = None

    # fc1 + ReLU: bf16 operands (cast in-kernel on the VPU), f32 accumulation.
    xb = x_ref[...].astype(jnp.bfloat16)
    h1 = jnp.dot(xb, w1_ref[...], preferred_element_type=jnp.float32)
    h1 = jnp.maximum(h1 + b1_ref[...], 0.0).astype(jnp.bfloat16)

    # fc2
    h2 = jnp.dot(h1, w2_ref[...], preferred_element_type=jnp.float32)
    h2 = (h2 + b2_ref[...]).astype(jnp.bfloat16)

    # dropout (train only): mask already carries the 1/(1-p) scale -> one bf16 mul
    if mask_ref is not None:
        h2 = h2 * mask_ref[...]

    # fc3
    out = jnp.dot(h2, w3_ref[...], preferred_element_type=jnp.float32)
    o_ref[...] = (out + b3_ref[...]).astype(o_ref.dtype)


# --------------------------------------------------------------------------
# Per-layer tiled matmul fallback (weights too large to keep fully resident)
# --------------------------------------------------------------------------
def _linear_kernel(x_ref, w_ref, b_ref, o_ref, acc_ref, *, relu: bool):
    @pl.when(pl.program_id(2) == 0)
    def _():
        acc_ref[...] = jnp.zeros_like(acc_ref)

    acc_ref[...] += jnp.dot(x_ref[...].astype(jnp.bfloat16), w_ref[...],
                            preferred_element_type=jnp.float32)

    @pl.when(pl.program_id(2) == pl.num_programs(2) - 1)
    def _():
        r = acc_ref[...] + b_ref[...]
        if relu:
            r = jnp.maximum(r, 0.0)
        o_ref[...] = r.astype(o_ref.dtype)


def _linear_pallas(x, w, b, *, relu=False, out_dtype=jnp.float32):
    """Tiled y = act(x @ w + b) with a K-reduction grid axis."""
    m, k = x.shape
    _, n = w.shape
    tm = int(min(256, _round_up(m, _LANE)))
    tk = int(min(512, _round_up(k, _LANE)))
    tn = 256 if n % 256 == 0 else _LANE
    mp, kp = _round_up(m, tm), _round_up(k, tk)
    if (mp, kp) != (m, k):
        x = jnp.pad(x, ((0, mp - m), (0, kp - k)))
    if kp != k:
        w = jnp.pad(w, ((0, kp - k), (0, 0)))

    out = pl.pallas_call(
        functools.partial(_linear_kernel, relu=relu),
        out_shape=jax.ShapeDtypeStruct((mp, n), out_dtype),
        grid=(mp // tm, n // tn, kp // tk),
        in_specs=[pl.BlockSpec((tm, tk), lambda i, j, l: (i, l)),
                  pl.BlockSpec((tk, tn), lambda i, j, l: (l, j)),
                  pl.BlockSpec((1, tn), lambda i, j, l: (0, j))],
        out_specs=pl.BlockSpec((tm, tn), lambda i, j, l: (i, j)),
        scratch_shapes=[pltpu.VMEM((tm, tn), jnp.float32)],
        compiler_params=pltpu.CompilerParams(
            dimension_semantics=("parallel", "parallel", "arbitrary")),
    )(x, w, b)
    return out[:m]


# --------------------------------------------------------------------------
# Parameter prep + forward wrapper
# --------------------------------------------------------------------------
def prepare_params(params):
    """One-time prep (call at load time, NOT per forward): transpose PyTorch
    (out,in) weights to (in,out), zero-pad the output/hidden lane dims to
    multiples of 128 (the input_dim contraction stays un-padded so x needs no
    wrapper-side pad), cast matmul operands to bf16; biases stay f32."""
    in_dim, h1_dim = params["w1"].shape[1], params["w1"].shape[0]
    h2_dim, n_cls = params["w2"].shape[0], params["w3"].shape[0]
    h1_p, h2_p, cls_p = (_round_up(d, _LANE) for d in (h1_dim, h2_dim, n_cls))

    w1 = _pad2d(params["w1"].T, in_dim, h1_p).astype(jnp.bfloat16)
    w2 = _pad2d(params["w2"].T, h1_p, h2_p).astype(jnp.bfloat16)
    w3 = _pad2d(params["w3"].T, h2_p, cls_p).astype(jnp.bfloat16)
    b1 = _pad2d(params["b1"].reshape(1, -1).astype(jnp.float32), 1, h1_p)
    b2 = _pad2d(params["b2"].reshape(1, -1).astype(jnp.float32), 1, h2_p)
    b3 = _pad2d(params["b3"].reshape(1, -1).astype(jnp.float32), 1, cls_p)
    return {"w1": w1, "b1": b1, "w2": w2, "b2": b2, "w3": w3, "b3": b3,
            "dims": (in_dim, h1_dim, h2_dim, n_cls),
            "padded": (h1_p, h2_p, cls_p)}


def _choose_tm(act_budget_bytes, in_dim, h1_p, h2_p, cls_p, out_bytes, with_mask):
    """Largest multiple-of-256 batch tile whose working set fits the activation
    budget: f32 x tile (2 pipeline buffers) + in-kernel bf16 copy, f32+bf16
    h1/h2, bf16 mask (2 buffers, train only), out tile (2 buffers), plus ~30%
    margin for spills / where-temporaries."""
    per_row = (2 * 4 * in_dim + 2 * in_dim
               + 6 * h1_p
               + 6 * h2_p + (4 * h2_p if with_mask else 0)
               + 2 * out_bytes * cls_p)
    per_row = int(per_row * 1.3) + 1
    tm = (act_budget_bytes // per_row // 256) * 256
    return int(max(_LANE, min(tm, 1024)))


def mlp_forward(x, prep, *, train=False, drop_p=0.2, seed=0,
                out_dtype=jnp.float32, force_layerwise=False):
    """x: (N, input_dim). prep: output of prepare_params.
    train=False matches model.eval() (dropout is identity)."""
    assert 0.0 <= drop_p < 1.0, "drop_p must be in [0, 1)"
    n, in_dim = x.shape
    in_d, _, _, n_cls = prep["dims"]
    h1_p, h2_p, cls_p = prep["padded"]
    assert in_dim == in_d
    with_mask = bool(train) and drop_p > 0.0
    out_bytes = jnp.dtype(out_dtype).itemsize

    # Generation-aware VMEM budget (v7x: 64 MiB per TC, v5e/v6e: 128 MiB).
    usable = (_vmem_capacity_bytes() * 13) // 16          # headroom for scratch
    weight_elems = in_dim * h1_p + h1_p * h2_p + h2_p * cls_p
    wbytes = 2 * weight_elems + 4 * (h1_p + h2_p + cls_p)  # single-buffered bf16 + f32 bias

    if force_layerwise or wbytes > usable // 2:
        # Weights too large to keep fully resident -> per-layer tiled matmuls.
        h = _linear_pallas(x, prep["w1"], prep["b1"], relu=True)
        h = _linear_pallas(h, prep["w2"], prep["b2"], relu=False)
        if with_mask:
            keep = jax.random.bernoulli(jax.random.PRNGKey(seed),
                                        1.0 - drop_p, (n, h2_p))
            h = h * jnp.where(keep, 1.0 / (1.0 - drop_p), 0.0).astype(h.dtype)
        out = _linear_pallas(h, prep["w3"], prep["b3"], relu=False,
                             out_dtype=out_dtype)
        return out[:, :n_cls]

    # ------------------------- fused single-kernel path ----------------------
    if n <= _LANE:
        tm = n                                     # block == full dim, no row pad
    else:
        tm = _choose_tm(max(usable - wbytes, usable // 8),
                        in_dim, h1_p, h2_p, cls_p, out_bytes, with_mask)
        tm = min(tm, _round_up(n, _LANE))
        tm = min(tm, _round_up((n + 1) // 2, _LANE))  # >=2 grid steps -> megacore
    n_pad = _round_up(n, tm)
    x_p = x if n_pad == n else jnp.pad(x, ((0, n_pad - n), (0, 0)))

    in_specs = [pl.BlockSpec((tm, in_dim), lambda i: (i, 0))]
    args = [x_p]
    if with_mask:
        # TODO(synk): on real TPU generate the keep-mask with in-kernel
        # pltpu.prng_random_bits (saves the n*h2_p HBM read); host-side
        # jax.random is used so the kernel also lowers on CPU/interpret harness.
        keep = jax.random.bernoulli(jax.random.PRNGKey(seed),
                                    1.0 - drop_p, (n_pad, h2_p))
        mask = jnp.where(keep, 1.0 / (1.0 - drop_p), 0.0).astype(jnp.bfloat16)
        in_specs.append(pl.BlockSpec((tm, h2_p), lambda i: (i, 0)))
        args.append(mask)
    in_specs += [
        _resident_spec((in_dim, h1_p)), _resident_spec((1, h1_p)),   # w1, b1
        _resident_spec((h1_p, h2_p)), _resident_spec((1, h2_p)),     # w2, b2
        _resident_spec((h2_p, cls_p)), _resident_spec((1, cls_p)),   # w3, b3
    ]
    args += [prep["w1"], prep["b1"], prep["w2"], prep["b2"],
             prep["w3"], prep["b3"]]

    cost = pl.CostEstimate(
        flops=2 * n_pad * weight_elems,
        transcendentals=0,
        bytes_accessed=(4 * n_pad * in_dim + wbytes
                        + (2 * n_pad * h2_p if with_mask else 0)
                        + n_pad * cls_p * out_bytes))

    out_p = pl.pallas_call(
        functools.partial(_mlp_fused_kernel, with_mask=with_mask),
        out_shape=jax.ShapeDtypeStruct((n_pad, cls_p), out_dtype),
        grid=(n_pad // tm,),
        in_specs=in_specs,
        out_specs=pl.BlockSpec((tm, cls_p), lambda i: (i, 0)),
        compiler_params=pltpu.CompilerParams(
            dimension_semantics=("parallel",),   # shard batch tiles across TCs
            vmem_limit_bytes=int(usable)),
        cost_estimate=cost,
    )(*args)

    return out_p[:n, :n_cls]


# --------------------------------------------------------------------------
# Reference + test
# --------------------------------------------------------------------------
def _init_params(key, input_dim, hidden_dim1, hidden_dim2, num_classes):
    """Deterministic init mirroring nn.Linear's U(-1/sqrt(fan_in), 1/sqrt(fan_in))."""
    ks = jax.random.split(key, 6)

    def lin(kw, kb, fan_in, fan_out):
        bound = 1.0 / (fan_in ** 0.5)
        w = jax.random.uniform(kw, (fan_out, fan_in), jnp.float32, -bound, bound)
        b = jax.random.uniform(kb, (fan_out,), jnp.float32, -bound, bound)
        return w, b

    w1, b1 = lin(ks[0], ks[1], input_dim, hidden_dim1)
    w2, b2 = lin(ks[2], ks[3], hidden_dim1, hidden_dim2)
    w3, b3 = lin(ks[4], ks[5], hidden_dim2, num_classes)
    return {"w1": w1, "b1": b1, "w2": w2, "b2": b2, "w3": w3, "b3": b3}


def _reference(x, params):
    h = jnp.maximum(x @ params["w1"].T + params["b1"], 0.0)
    h = h @ params["w2"].T + params["b2"]        # dropout identity in eval mode
    return h @ params["w3"].T + params["b3"]


if __name__ == "__main__":
    batch, input_dim, hidden_dim1, hidden_dim2, num_classes = 8, 32, 64, 64, 8

    key = jax.random.PRNGKey(0)
    kx, kp = jax.random.split(key)
    x = jax.random.normal(kx, (batch, input_dim), dtype=jnp.float32)
    params = _init_params(kp, input_dim, hidden_dim1, hidden_dim2, num_classes)
    prep = prepare_params(params)            # one-time transpose/pad/bf16 cast

    ref = _reference(x, params)

    # Eval-mode fused forward (dropout identity), matching model.eval().
    out = jax.block_until_ready(mlp_forward(x, prep, train=False))
    assert out.shape == (batch, num_classes)
    assert jnp.allclose(out, ref, atol=5e-2, rtol=5e-2), (
        f"fused max abs err {jnp.max(jnp.abs(out - ref))}")

    # Layer-wise fallback (auto-selected when weights don't fit VMEM).
    out_lw = jax.block_until_ready(
        mlp_forward(x, prep, train=False, force_layerwise=True))
    assert out_lw.shape == (batch, num_classes)
    assert jnp.allclose(out_lw, ref, atol=5e-2, rtol=5e-2), (
        f"layerwise max abs err {jnp.max(jnp.abs(out_lw - ref))}")

    # Train-mode smoke test (exercises the dropout-mask input path).
    out_tr = jax.block_until_ready(mlp_forward(x, prep, train=True, seed=123))
    assert out_tr.shape == (batch, num_classes)
    assert bool(jnp.isfinite(out_tr).all())

    print("KERNEL_OK")
</pallas_src>

<mosaic_0001>
module attributes {stable_mosaic.version = 11 : i64} {
  func.func @_mlp_fused_kernel(%arg0: i32, %arg1: memref<8x32xf32, #tpu.memory_space<vmem>>, %arg2: memref<32x128xbf16, #tpu.memory_space<vmem>>, %arg3: memref<1x128xf32, #tpu.memory_space<vmem>>, %arg4: memref<128x128xbf16, #tpu.memory_space<vmem>>, %arg5: memref<1x128xf32, #tpu.memory_space<vmem>>, %arg6: memref<128x128xbf16, #tpu.memory_space<vmem>>, %arg7: memref<1x128xf32, #tpu.memory_space<vmem>>, %arg8: memref<8x128xf32, #tpu.memory_space<vmem>>) attributes {dimension_semantics = [#tpu.dimension_semantics<parallel>], iteration_bounds = array<i64: 1>, scalar_prefetch = 0 : i64, scratch_operands = 0 : i64, tpu.core_type = #tpu.core_type<tc>, window_params = [{transform_indices = @transform_0, window_bounds = array<i64: 8, 32>}, {pipeline_mode = #tpu.pipeline_mode<synchronous>, transform_indices = @transform_1, window_bounds = array<i64: 32, 128>}, {pipeline_mode = #tpu.pipeline_mode<synchronous>, transform_indices = @transform_2, window_bounds = array<i64: 1, 128>}, {pipeline_mode = #tpu.pipeline_mode<synchronous>, transform_indices = @transform_3, window_bounds = array<i64: 128, 128>}, {pipeline_mode = #tpu.pipeline_mode<synchronous>, transform_indices = @transform_4, window_bounds = array<i64: 1, 128>}, {pipeline_mode = #tpu.pipeline_mode<synchronous>, transform_indices = @transform_5, window_bounds = array<i64: 128, 128>}, {pipeline_mode = #tpu.pipeline_mode<synchronous>, transform_indices = @transform_6, window_bounds = array<i64: 1, 128>}, {transform_indices = @transform_7, window_bounds = array<i64: 8, 128>}]} {
    %c0 = arith.constant 0 : index
    %c0_0 = arith.constant 0 : index
    %0 = vector.load %arg1[%c0, %c0_0] : memref<8x32xf32, #tpu.memory_space<vmem>>, vector<8x32xf32>
    %1 = arith.truncf %0 : vector<8x32xf32> to vector<8x32xbf16>
    %c0_1 = arith.constant 0 : index
    %c0_2 = arith.constant 0 : index
    %2 = vector.load %arg2[%c0_1, %c0_2] : memref<32x128xbf16, #tpu.memory_space<vmem>>, vector<32x128xbf16>
    %cst = arith.constant dense<0.000000e+00> : vector<8x128xf32>
    %3 = tpu.matmul %1, %2, %cst {dimension_numbers = #tpu.dot_dimension_numbers<[1], [0], [0], [1], [0, 0, 1, 1], [], []>} : vector<8x32xbf16>, vector<32x128xbf16>, vector<8x128xf32> -> vector<8x128xf32>
    %c0_3 = arith.constant 0 : index
    %c0_4 = arith.constant 0 : index
    %4 = vector.load %arg3[%c0_3, %c0_4] : memref<1x128xf32, #tpu.memory_space<vmem>>, vector<1x128xf32>
    %5 = vector.broadcast %4 : vector<1x128xf32> to vector<8x128xf32>
    %6 = arith.addf %3, %5 : vector<8x128xf32>
    %cst_5 = arith.constant 0.000000e+00 : f32
    %7 = vector.broadcast %cst_5 : f32 to vector<8x128xf32>
    %8 = arith.maximumf %6, %7 : vector<8x128xf32>
    %9 = arith.truncf %8 : vector<8x128xf32> to vector<8x128xbf16>
    %c0_6 = arith.constant 0 : index
    %c0_7 = arith.constant 0 : index
    %10 = vector.load %arg4[%c0_6, %c0_7] : memref<128x128xbf16, #tpu.memory_space<vmem>>, vector<128x128xbf16>
    %cst_8 = arith.constant dense<0.000000e+00> : vector<8x128xf32>
    %11 = tpu.matmul %9, %10, %cst_8 {dimension_numbers = #tpu.dot_dimension_numbers<[1], [0], [0], [1], [0, 0, 1, 1], [], []>} : vector<8x128xbf16>, vector<128x128xbf16>, vector<8x128xf32> -> vector<8x128xf32>
    %c0_9 = arith.constant 0 : index
    %c0_10 = arith.constant 0 : index
    %12 = vector.load %arg5[%c0_9, %c0_10] : memref<1x128xf32, #tpu.memory_space<vmem>>, vector<1x128xf32>
    %13 = vector.broadcast %12 : vector<1x128xf32> to vector<8x128xf32>
    %14 = arith.addf %11, %13 : vector<8x128xf32>
    %15 = arith.truncf %14 : vector<8x128xf32> to vector<8x128xbf16>
    %c0_11 = arith.constant 0 : index
    %c0_12 = arith.constant 0 : index
    %16 = vector.load %arg6[%c0_11, %c0_12] : memref<128x128xbf16, #tpu.memory_space<vmem>>, vector<128x128xbf16>
    %cst_13 = arith.constant dense<0.000000e+00> : vector<8x128xf32>
    %17 = tpu.matmul %15, %16, %cst_13 {dimension_numbers = #tpu.dot_dimension_numbers<[1], [0], [0], [1], [0, 0, 1, 1], [], []>} : vector<8x128xbf16>, vector<128x128xbf16>, vector<8x128xf32> -> vector<8x128xf32>
    %c0_14 = arith.constant 0 : index
    %c0_15 = arith.constant 0 : index
    %18 = vector.load %arg7[%c0_14, %c0_15] : memref<1x128xf32, #tpu.memory_space<vmem>>, vector<1x128xf32>
    %19 = vector.broadcast %18 : vector<1x128xf32> to vector<8x128xf32>
    %20 = arith.addf %17, %19 : vector<8x128xf32>
    %c0_16 = arith.constant 0 : index
    %c0_17 = arith.constant 0 : index
    %21 = vector.load %arg8[%c0_16, %c0_17] : memref<8x128xf32, #tpu.memory_space<vmem>>, vector<8x128xf32>
    tpu.vector_store %arg8[%c0_16, %c0_17], %20 {strides = array<i32>} : memref<8x128xf32, #tpu.memory_space<vmem>>, vector<8x128xf32>,
    return
  }
  func.func @transform_0(%arg0: i32) -> (i32, i32) {
    %c0_i32 = arith.constant 0 : i32
    %c0_i32_0 = arith.constant 0 : i32
    return %arg0, %c0_i32 : i32, i32
  }
  func.func @transform_1(%arg0: i32) -> (i32, i32) {
    %c0_i32 = arith.constant 0 : i32
    %c0_i32_0 = arith.constant 0 : i32
    %c0_i32_1 = arith.constant 0 : i32
    return %c0_i32, %c0_i32_0 : i32, i32
  }
  func.func @transform_2(%arg0: i32) -> (i32, i32) {
    %c0_i32 = arith.constant 0 : i32
    %c0_i32_0 = arith.constant 0 : i32
    %c0_i32_1 = arith.constant 0 : i32
    return %c0_i32, %c0_i32_0 : i32, i32
  }
  func.func @transform_3(%arg0: i32) -> (i32, i32) {
    %c0_i32 = arith.constant 0 : i32
    %c0_i32_0 = arith.constant 0 : i32
    %c0_i32_1 = arith.constant 0 : i32
    return %c0_i32, %c0_i32_0 : i32, i32
  }
  func.func @transform_4(%arg0: i32) -> (i32, i32) {
    %c0_i32 = arith.constant 0 : i32
    %c0_i32_0 = arith.constant 0 : i32
    %c0_i32_1 = arith.constant 0 : i32
    return %c0_i32, %c0_i32_0 : i32, i32
  }
  func.func @transform_5(%arg0: i32) -> (i32, i32) {
    %c0_i32 = arith.constant 0 : i32
    %c0_i32_0 = arith.constant 0 : i32
    %c0_i32_1 = arith.constant 0 : i32
    return %c0_i32, %c0_i32_0 : i32, i32
  }
  func.func @transform_6(%arg0: i32) -> (i32, i32) {
    %c0_i32 = arith.constant 0 : i32
    %c0_i32_0 = arith.constant 0 : i32
    %c0_i32_1 = arith.constant 0 : i32
    return %c0_i32, %c0_i32_0 : i32, i32
  }
  func.func @transform_7(%arg0: i32) -> (i32, i32) {
    %c0_i32 = arith.constant 0 : i32
    %c0_i32_0 = arith.constant 0 : i32
    return %arg0, %c0_i32 : i32, i32
  }
}

</mosaic_0001>

<llo_original>
// kernel: tpu_custom_call.1
$region0: #{tpu_custom_call.1}
  #allocation0 [shape = 'u32[]', space=smem, size = 0x4, offset = 0x4, fixed_abs, tag = 'smem constant byte address 0x4 - core index']
  #allocation1 [shape = 'u32[144,128]{1,0:T(1,128)}', space=vmem, size = 0x12000, scoped, tag = 'internal scratch']
  %s0 = inlined_call_operand.hbm [shape: f32[8,32], index: 0, kind: input, shape index: {}]
  %s1 = inlined_call_operand.hbm [shape: bf16[32,128], index: 1, kind: input, shape index: {}]
  %s2 = inlined_call_operand.vmem [shape: f32[1,128], index: 2, kind: input, shape index: {}]
  %s3 = inlined_call_operand.hbm [shape: bf16[128,128], index: 3, kind: input, shape index: {}]
  %s4 = inlined_call_operand.vmem [shape: f32[1,128], index: 4, kind: input, shape index: {}]
  %s5 = inlined_call_operand.hbm [shape: bf16[128,128], index: 5, kind: input, shape index: {}]
  %s6 = inlined_call_operand.vmem [shape: f32[1,128], index: 6, kind: input, shape index: {}]
  %s7 = inlined_call_operand.hbm [shape: f32[8,128], index: 7, kind: output, shape index: {}]
  %s8 = sld [smem:[#allocation0]]
  $region54: #{tpu_custom_call.1} parent=0
    _
  %s10 = ssub.s32 1, %s8
  %s11 = scalar_select 0, %s10, %s8
  $region1: #{tpu_custom_call.1} parent=0
    #allocation2 [shape = 'u8[4096]{0}', space=vmem, size = 0x1000, scoped, tag = 'input window, operand 0, single buffered']
    #allocation3 [shape = 's32[1]{0}', space=sflag, size = 0x4, scoped, tag = 'scoped memory for tpu_custom_call.1']
    #allocation4 [shape = 's32[1]{0}', space=sflag, size = 0x4, scoped, tag = 'scoped memory for tpu_custom_call.1']
    #allocation5 [shape = 'u8[8192]{0}', space=vmem, size = 0x2000, scoped, tag = 'input window, operand 1, single buffered']
    #allocation6 [shape = 's32[1]{0}', space=sflag, size = 0x4, scoped, tag = 'scoped memory for tpu_custom_call.1']
    #allocation7 [shape = 'u8[32768]{0}', space=vmem, size = 0x8000, scoped, tag = 'input window, operand 3, single buffered']
    #allocation8 [shape = 'u8[32768]{0}', space=vmem, size = 0x8000, scoped, tag = 'input window, operand 5, single buffered']
    #allocation9 [shape = 's32[1]{0}', space=sflag, size = 0x4, scoped, tag = 'scoped memory for tpu_custom_call.1']
    #allocation10 [shape = 'u8[4096]{0}', space=vmem, size = 0x1000, scoped, tag = 'output window, operand 0, single buffered']
    %12 = vsyncpa [#allocation3], 0
    %13 = vsyncpa [#allocation6], 0
    %14 = vsyncpa [#allocation9], 0
    %15 = vsyncpa [#allocation4], 0
    // Predicated region
    $region2: #{tpu_custom_call.1} parent=1 // pred_check
      _
    $region3: #{tpu_custom_call.1} parent=1 // pred_check_branch
      %17 = sbr.rel (0) target = $region5
    $region4: #{tpu_custom_call.1} parent=1 // pred_region
      %s19 = ssub.s32 128, 128
      %20 = vsyncadd [#allocation3], %s19
      %s22 = sshll.u32 [#allocation2], 4
      %s23 = int_to_ptr.vmem [resolvable:$true] %s22
      %25 = dma.hbm_to_vmem [thread:$0]  %s0, 128, %s23, [#allocation3]
    $region5: #{tpu_custom_call.1} parent=1 // pred_fallthru
      _
    // Predicated region
    $region6: #{tpu_custom_call.1} parent=1 // pred_check
      _
    $region7: #{tpu_custom_call.1} parent=1 // pred_check_branch
      %27 = sbr.rel (0) target = $region9
    $region8: #{tpu_custom_call.1} parent=1 // pred_region
      %s29 = ssub.s32 256, 256
      %30 = vsyncadd [#allocation6], %s29
      %s31 = sshll.u32 [#allocation5], 4
      %s32 = int_to_ptr.vmem [resolvable:$true] %s31
      %37 = dma.hbm_to_vmem [thread:$0]  %s1, 256, %s32, [#allocation6], 64, 64, 4
    $region9: #{tpu_custom_call.1} parent=1 // pred_fallthru
      _
    // Predicated region
    $region10: #{tpu_custom_call.1} parent=1 // pred_check
      _
    $region11: #{tpu_custom_call.1} parent=1 // pred_check_branch
      %39 = sbr.rel (0) target = $region13
    $region12: #{tpu_custom_call.1} parent=1 // pred_region
      _
    $region13: #{tpu_custom_call.1} parent=1 // pred_fallthru
      _
    // Predicated region
    $region14: #{tpu_custom_call.1} parent=1 // pred_check
      _
    $region15: #{tpu_custom_call.1} parent=1 // pred_check_branch
      %41 = sbr.rel (0) target = $region17
    $region16: #{tpu_custom_call.1} parent=1 // pred_region
      %s43 = ssub.s32 1024, 1024
      %44 = vsyncadd [#allocation6], %s43
      %s45 = sshll.u32 [#allocation7], 4
      %s46 = int_to_ptr.vmem [resolvable:$true] %s45
      %51 = dma.hbm_to_vmem [thread:$0]  %s3, 1024, %s46, [#allocation6], 64, 64, 4
    $region17: #{tpu_custom_call.1} parent=1 // pred_fallthru
      _
    // Predicated region
    $region18: #{tpu_custom_call.1} parent=1 // pred_check
      _
    $region19: #{tpu_custom_call.1} parent=1 // pred_check_branch
      %53 = sbr.rel (0) target = $region21
    $region20: #{tpu_custom_call.1} parent=1 // pred_region
      _
    $region21: #{tpu_custom_call.1} parent=1 // pred_fallthru
      _
    // Predicated region
    $region22: #{tpu_custom_call.1} parent=1 // pred_check
      _
    $region23: #{tpu_custom_call.1} parent=1 // pred_check_branch
      %55 = sbr.rel (0) target = $region25
    $region24: #{tpu_custom_call.1} parent=1 // pred_region
      %s57 = ssub.s32 1024, 1024
      %58 = vsyncadd [#allocation9], %s57
      %s59 = sshll.u32 [#allocation8], 4
      %s60 = int_to_ptr.vmem [resolvable:$true] %s59
      %65 = dma.hbm_to_vmem [thread:$0]  %s5, 1024, %s60, [#allocation9], 64, 64, 4
    $region25: #{tpu_custom_call.1} parent=1 // pred_fallthru
      _
    // Predicated region
    $region26: #{tpu_custom_call.1} parent=1 // pred_check
      _
    $region27: #{tpu_custom_call.1} parent=1 // pred_check_branch
      %67 = sbr.rel (0) target = $region29
    $region28: #{tpu_custom_call.1} parent=1 // pred_region
      _
    $region29: #{tpu_custom_call.1} parent=1 // pred_fallthru
      _
    // Predicated region
    $region30: #{tpu_custom_call.1} parent=1 // pred_check
      _
    $region31: #{tpu_custom_call.1} parent=1 // pred_check_branch
      %69 = sbr.rel (0) target = $region33
    $region32: #{tpu_custom_call.1} parent=1 // pred_region
      %70 = dma.done [#allocation3], 128
    $region33: #{tpu_custom_call.1} parent=1 // pred_fallthru
      _
    // Predicated region
    $region34: #{tpu_custom_call.1} parent=1 // pred_check
      _
    $region35: #{tpu_custom_call.1} parent=1 // pred_check_branch
      %72 = sbr.rel (0) target = $region37
    $region36: #{tpu_custom_call.1} parent=1 // pred_region
      %73 = dma.done [#allocation6], 256
    $region37: #{tpu_custom_call.1} parent=1 // pred_fallthru
      _
    // Predicated region
    $region38: #{tpu_custom_call.1} parent=1 // pred_check
      _
    $region39: #{tpu_custom_call.1} parent=1 // pred_check_branch
      %75 = sbr.rel (0) target = $region41
    $region40: #{tpu_custom_call.1} parent=1 // pred_region
      %76 = dma.done [#allocation6], 1024
    $region41: #{tpu_custom_call.1} parent=1 // pred_fallthru
      _
    // Predicated region
    $region42: #{tpu_custom_call.1} parent=1 // pred_check
      _
    $region43: #{tpu_custom_call.1} parent=1 // pred_check_branch
      %78 = sbr.rel (0) target = $region45
    $region44: #{tpu_custom_call.1} parent=1 // pred_region
      %79 = dma.done [#allocation9], 1024
    $region45: #{tpu_custom_call.1} parent=1 // pred_fallthru
      _
    %v81 = vld [vmem:[#allocation2] sm:$0xff]
    %v82 = vpack.c.bf16 %v81, %v81
    %v83 = vld [vmem:[#allocation5] sm:$0xf]
    %v84 = vld [vmem:[#allocation5 + $0x4] sm:$0xf]
    %v85 = vld [vmem:[#allocation5 + $0x8] sm:$0xf]
    %v86 = vld [vmem:[#allocation5 + $0xc] sm:$0xf]
    %v87 = vld [vmem:[%s2] sm:$0x1]
    %v89 = vlaneseq
    %v90 = vshrl.u32 %v89, 7
    %v91 = vsub.s32 0, %v90
    %v92 = vrot.slane %v87, %v91
    %v98 = vunpack.c.l.b16 %v83
    %v99 = vunpack.c.l.b16 %v84
    %v100 = vunpack.c.l.b16 %v85
    %v101 = vunpack.c.l.b16 %v86
    %v102 = vpack.c.b16 %v99, %v98
    %v103 = vpack.c.b16 %v101, %v100
    %vm106 = vcmask 261120
    %v108 = vsel %vm106, %v82, 0
    %110 = vmatprep.subr.bf16.mxu0 0
    %111 = vmatpush1.bf16.msra.mxu0 0
    %112 = vmatprep.subr.bf16.mxu0 0
    %113 = vmatpush1.bf16.msra.mxu0 0
    %114 = vmatprep.subr.bf16.mxu0 0
    %115 = vmatpush1.bf16.msra.mxu0 0
    %116 = vmatprep.subr.bf16.mxu0 0
    %117 = vmatpush1.bf16.msra.mxu0 0
    %118 = vmatprep.subr.bf16.mxu0 0
    %119 = vmatpush1.bf16.msra.mxu0 0
    %120 = vmatprep.subr.bf16.mxu0 0
    %121 = vmatpush1.bf16.msra.mxu0 0
    %122 = vmatprep.subr.bf16.mxu0 0
    %123 = vmatpush1.bf16.msra.mxu0 %v103
    %124 = vmatprep.subr.bf16.mxu0 0
    %125 = vmatpush1.bf16.msra.mxu0 %v102
    %126 = vmatprep.subr.bf16.mxu0 0
    %127 = vmatpush2.bf16.msra.mxu0 0
    %128 = vmatprep.subr.bf16.mxu0 0
    %129 = vmatpush2.bf16.msra.mxu0 0
    %130 = vmatprep.subr.bf16.mxu0 0
    %131 = vmatpush2.bf16.msra.mxu0 0
    %132 = vmatprep.subr.bf16.mxu0 0
    %133 = vmatpush2.bf16.msra.mxu0 0
    %134 = vmatprep.subr.bf16.mxu0 0
    %135 = vmatpush2.bf16.msra.mxu0 0
    %136 = vmatprep.subr.bf16.mxu0 0
    %137 = vmatpush2.bf16.msra.mxu0 0
    %138 = vmatprep.subr.bf16.mxu0 0
    %139 = vmatpush2.bf16.msra.mxu0 0
    %140 = vmatprep.subr.bf16.mxu0 0
    %141 = vmatpush2.bf16.msra.mxu0 0
    %142 = vmatprep.mubr.bf16.mxu0 0
    %143 = vmatmul.mubr.bf16.gmra.mxu0 %v108
    %v144 = vpop.f32.mrf.mxu0
    %v145 = vadd.f32 %v92, %v144
    %v146 = vpop.f32.mrf.mxu0
    %v147 = vpop.f32.mrf.mxu0
    %v148 = vpop.f32.mrf.mxu0
    %149 = vdwg.mxu0
    %v150 = vmax.f32 %v145, 0.0
    %v151 = vpack.c.bf16 %v150, %v150
    %v152 = vld [vmem:[#allocation7] sm:$0xf]
    %v153 = vld [vmem:[#allocation7 + $0x4] sm:$0xf]
    %v154 = vld [vmem:[#allocation7 + $0x8] sm:$0xf]
    %v155 = vld [vmem:[#allocation7 + $0xc] sm:$0xf]
    %v156 = vld [vmem:[#allocation7 + $0x10] sm:$0xf]
    %v157 = vld [vmem:[#allocation7 + $0x14] sm:$0xf]
    %v158 = vld [vmem:[#allocation7 + $0x18] sm:$0xf]
    %v159 = vld [vmem:[#allocation7 + $0x1c] sm:$0xf]
    %v160 = vld [vmem:[#allocation7 + $0x20] sm:$0xf]
    %v161 = vld [vmem:[#allocation7 + $0x24] sm:$0xf]
    %v162 = vld [vmem:[#allocation7 + $0x28] sm:$0xf]
    %v163 = vld [vmem:[#allocation7 + $0x2c] sm:$0xf]
    %v164 = vld [vmem:[#allocation7 + $0x30] sm:$0xf]
    %v165 = vld [vmem:[#allocation7 + $0x34] sm:$0xf]
    %v166 = vld [vmem:[#allocation7 + $0x38] sm:$0xf]
    %v167 = vld [vmem:[#allocation7 + $0x3c] sm:$0xf]
    %v168 = vld [vmem:[%s4] sm:$0x1]
    %v170 = vlaneseq
    %v171 = vshrl.u32 %v170, 7
    %v172 = vsub.s32 0, %v171
    %v173 = vrot.slane %v168, %v172
    %v191 = vunpack.c.l.b16 %v152
    %v192 = vunpack.c.l.b16 %v153
    %v193 = vunpack.c.l.b16 %v154
    %v194 = vunpack.c.l.b16 %v155
    %v195 = vunpack.c.l.b16 %v156
    %v196 = vunpack.c.l.b16 %v157
    %v197 = vunpack.c.l.b16 %v158
    %v198 = vunpack.c.l.b16 %v159
    %v199 = vunpack.c.l.b16 %v160
    %v200 = vunpack.c.l.b16 %v161
    %v201 = vunpack.c.l.b16 %v162
    %v202 = vunpack.c.l.b16 %v163
    %v203 = vunpack.c.l.b16 %v164
    %v204 = vunpack.c.l.b16 %v165
    %v205 = vunpack.c.l.b16 %v166
    %v206 = vunpack.c.l.b16 %v167
    %v207 = vpack.c.b16 %v192, %v191
    %v208 = vpack.c.b16 %v194, %v193
    %v209 = vpack.c.b16 %v196, %v195
    %v210 = vpack.c.b16 %v198, %v197
    %v211 = vpack.c.b16 %v200, %v199
    %v212 = vpack.c.b16 %v202, %v201
    %v213 = vpack.c.b16 %v204, %v203
    %v214 = vpack.c.b16 %v206, %v205
    %223 = vmatprep.subr.bf16.mxu0 0
    %224 = vmatpush1.bf16.msra.mxu0 %v214
    %225 = vmatprep.subr.bf16.mxu0 0
    %226 = vmatpush1.bf16.msra.mxu0 %v213
    %227 = vmatprep.subr.bf16.mxu0 0
    %228 = vmatpush1.bf16.msra.mxu0 %v212
    %229 = vmatprep.subr.bf16.mxu0 0
    %230 = vmatpush1.bf16.msra.mxu0 %v211
    %231 = vmatprep.subr.bf16.mxu0 0
    %232 = vmatpush1.bf16.msra.mxu0 %v210
    %233 = vmatprep.subr.bf16.mxu0 0
    %234 = vmatpush1.bf16.msra.mxu0 %v209
    %235 = vmatprep.subr.bf16.mxu0 0
    %236 = vmatpush1.bf16.msra.mxu0 %v208
    %237 = vmatprep.subr.bf16.mxu0 0
    %238 = vmatpush1.bf16.msra.mxu0 %v207
    %239 = vmatprep.subr.bf16.mxu0 0
    %240 = vmatpush2.bf16.msra.mxu0 0
    %241 = vmatprep.subr.bf16.mxu0 0
    %242 = vmatpush2.bf16.msra.mxu0 0
    %243 = vmatprep.subr.bf16.mxu0 0
    %244 = vmatpush2.bf16.msra.mxu0 0
    %245 = vmatprep.subr.bf16.mxu0 0
    %246 = vmatpush2.bf16.msra.mxu0 0
    %247 = vmatprep.subr.bf16.mxu0 0
    %248 = vmatpush2.bf16.msra.mxu0 0
    %249 = vmatprep.subr.bf16.mxu0 0
    %250 = vmatpush2.bf16.msra.mxu0 0
    %251 = vmatprep.subr.bf16.mxu0 0
    %252 = vmatpush2.bf16.msra.mxu0 0
    %253 = vmatprep.subr.bf16.mxu0 0
    %254 = vmatpush2.bf16.msra.mxu0 0
    %255 = vmatprep.mubr.bf16.mxu0 0
    %256 = vmatmul.mubr.bf16.gmra.mxu0 %v151
    %v257 = vpop.f32.mrf.mxu0
    %v258 = vadd.f32 %v173, %v257
    %v259 = vpop.f32.mrf.mxu0
    %v260 = vpop.f32.mrf.mxu0
    %v261 = vpop.f32.mrf.mxu0
    %262 = vdwg.mxu0
    %v263 = vpack.c.bf16 %v258, %v258
    %v264 = vld [vmem:[#allocation8] sm:$0xf]
    %v265 = vld [vmem:[#allocation8 + $0x4] sm:$0xf]
    %v266 = vld [vmem:[#allocation8 + $0x8] sm:$0xf]
    %v267 = vld [vmem:[#allocation8 + $0xc] sm:$0xf]
    %v268 = vld [vmem:[#allocation8 + $0x10] sm:$0xf]
    %v269 = vld [vmem:[#allocation8 + $0x14] sm:$0xf]
    %v270 = vld [vmem:[#allocation8 + $0x18] sm:$0xf]
    %v271 = vld [vmem:[#allocation8 + $0x1c] sm:$0xf]
    %v272 = vld [vmem:[#allocation8 + $0x20] sm:$0xf]
    %v273 = vld [vmem:[#allocation8 + $0x24] sm:$0xf]
    %v274 = vld [vmem:[#allocation8 + $0x28] sm:$0xf]
    %v275 = vld [vmem:[#allocation8 + $0x2c] sm:$0xf]
    %v276 = vld [vmem:[#allocation8 + $0x30] sm:$0xf]
    %v277 = vld [vmem:[#allocation8 + $0x34] sm:$0xf]
    %v278 = vld [vmem:[#allocation8 + $0x38] sm:$0xf]
    %v279 = vld [vmem:[#allocation8 + $0x3c] sm:$0xf]
    %v280 = vld [vmem:[%s6] sm:$0x1]
    %v282 = vlaneseq
    %v283 = vshrl.u32 %v282, 7
    %v284 = vsub.s32 0, %v283
    %v285 = vrot.slane %v280, %v284
    %v303 = vunpack.c.l.b16 %v264
    %v304 = vunpack.c.l.b16 %v265
    %v305 = vunpack.c.l.b16 %v266
    %v306 = vunpack.c.l.b16 %v267
    %v307 = vunpack.c.l.b16 %v268
    %v308 = vunpack.c.l.b16 %v269
    %v309 = vunpack.c.l.b16 %v270
    %v310 = vunpack.c.l.b16 %v271
    %v311 = vunpack.c.l.b16 %v272
    %v312 = vunpack.c.l.b16 %v273
    %v313 = vunpack.c.l.b16 %v274
    %v314 = vunpack.c.l.b16 %v275
    %v315 = vunpack.c.l.b16 %v276
    %v316 = vunpack.c.l.b16 %v277
    %v317 = vunpack.c.l.b16 %v278
    %v318 = vunpack.c.l.b16 %v279
    %v319 = vpack.c.b16 %v304, %v303
    %v320 = vpack.c.b16 %v306, %v305
    %v321 = vpack.c.b16 %v308, %v307
    %v322 = vpack.c.b16 %v310, %v309
    %v323 = vpack.c.b16 %v312, %v311
    %v324 = vpack.c.b16 %v314, %v313
    %v325 = vpack.c.b16 %v316, %v315
    %v326 = vpack.c.b16 %v318, %v317
    %335 = vmatprep.subr.bf16.mxu0 0
    %336 = vmatpush1.bf16.msra.mxu0 %v326
    %337 = vmatprep.subr.bf16.mxu0 0
    %338 = vmatpush1.bf16.msra.mxu0 %v325
    %339 = vmatprep.subr.bf16.mxu0 0
    %340 = vmatpush1.bf16.msra.mxu0 %v324
    %341 = vmatprep.subr.bf16.mxu0 0
    %342 = vmatpush1.bf16.msra.mxu0 %v323
    %343 = vmatprep.subr.bf16.mxu0 0
    %344 = vmatpush1.bf16.msra.mxu0 %v322
    %345 = vmatprep.subr.bf16.mxu0 0
    %346 = vmatpush1.bf16.msra.mxu0 %v321
    %347 = vmatprep.subr.bf16.mxu0 0
    %348 = vmatpush1.bf16.msra.mxu0 %v320
    %349 = vmatprep.subr.bf16.mxu0 0
    %350 = vmatpush1.bf16.msra.mxu0 %v319
    %351 = vmatprep.subr.bf16.mxu0 0
    %352 = vmatpush2.bf16.msra.mxu0 0
    %353 = vmatprep.subr.bf16.mxu0 0
    %354 = vmatpush2.bf16.msra.mxu0 0
    %355 = vmatprep.subr.bf16.mxu0 0
    %356 = vmatpush2.bf16.msra.mxu0 0
    %357 = vmatprep.subr.bf16.mxu0 0
    %358 = vmatpush2.bf16.msra.mxu0 0
    %359 = vmatprep.subr.bf16.mxu0 0
    %360 = vmatpush2.bf16.msra.mxu0 0
    %361 = vmatprep.subr.bf16.mxu0 0
    %362 = vmatpush2.bf16.msra.mxu0 0
    %363 = vmatprep.subr.bf16.mxu0 0
    %364 = vmatpush2.bf16.msra.mxu0 0
    %365 = vmatprep.subr.bf16.mxu0 0
    %366 = vmatpush2.bf16.msra.mxu0 0
    %367 = vmatprep.mubr.bf16.mxu0 0
    %368 = vmatmul.mubr.bf16.gmra.mxu0 %v263
    %v369 = vpop.f32.mrf.mxu0
    %v370 = vadd.f32 %v285, %v369
    %v371 = vpop.f32.mrf.mxu0
    %v372 = vpop.f32.mrf.mxu0
    %v373 = vpop.f32.mrf.mxu0
    %374 = vdwg.mxu0
    %375 = vst [vmem:[#allocation10] sm:$0xff] %v370
    // Predicated region
    $region46: #{tpu_custom_call.1} parent=1 // pred_check
      _
    $region47: #{tpu_custom_call.1} parent=1 // pred_check_branch
      %377 = sbr.rel (0) target = $region49
    $region48: #{tpu_custom_call.1} parent=1 // pred_region
      %s379 = ssub.s32 128, 128
      %380 = vsyncadd [#allocation4], %s379
      %s382 = sshll.u32 [#allocation10], 4
      %s383 = int_to_ptr.vmem [resolvable:$true] %s382
      %385 = dma.vmem_to_hbm [thread:$0]  %s383, 128, %s7, [#allocation4]
    $region49: #{tpu_custom_call.1} parent=1 // pred_fallthru
      _
    // Predicated region
    $region50: #{tpu_custom_call.1} parent=1 // pred_check
      _
    $region51: #{tpu_custom_call.1} parent=1 // pred_check_branch
      %387 = sbr.rel (0) target = $region53
    $region52: #{tpu_custom_call.1} parent=1 // pred_region
      %388 = dma.done [#allocation4], 128
    $region53: #{tpu_custom_call.1} parent=1 // pred_fallthru
      _
    %389 = vsyncpa [#allocation3], 1
    %390 = vsyncpa [#allocation6], 1
    %391 = vsyncpa [#allocation9], 1
    %392 = vsyncpa [#allocation4], 1

</llo_original>
